<compile_context>
chip_gen: v7x
topology: tpu7x:2x2x1
jax: 0.10.0
libtpu: 0.0.40
codegen_flags: <defaults>
</compile_context>

<pallas_src>
import math
import functools

import jax
import jax.numpy as jnp
from jax.experimental import pallas as pl
from jax.experimental.pallas import tpu as pltpu


def _round_up(v, m):
    return ((v + m - 1) // m) * m


# --------------------------------------------------------------------------
# Kernel 1: x_proj MLP over node tiles:  Linear(H->H/2) -> ScaledSiLU -> Linear(H/2->3H)
# --------------------------------------------------------------------------
def _x_proj_kernel(x_ref, w1_ref, b1_ref, w2_ref, b2_ref, xh_ref):
    x = x_ref[...]
    h = jnp.dot(x, w1_ref[...], preferred_element_type=jnp.float32) + b1_ref[...]
    h = h * jax.nn.sigmoid(h) * (1.0 / 0.6)            # ScaledSiLU
    xh = jnp.dot(h, w2_ref[...], preferred_element_type=jnp.float32) + b2_ref[...]
    xh_ref[...] = xh.astype(xh_ref.dtype)


# --------------------------------------------------------------------------
# Kernel 2: per-edge messages + scatter-add over edge tiles.
#   grid axis = edges ("arbitrary"); output is a VMEM-resident (N, 4H) accumulator.
# --------------------------------------------------------------------------
def _edge_message_kernel(j_ref, i_ref, rbf_ref, ev_ref, table_ref, we_ref, be_ref,
                         out_ref, *, hidden):
    H = hidden
    te = rbf_ref.shape[0]
    n_nodes = table_ref.shape[0]
    inv_sqrt_3 = 1.0 / math.sqrt(3.0)
    inv_sqrt_h = 1.0 / math.sqrt(float(H))

    @pl.when(pl.program_id(0) == 0)
    def _init():
        out_ref[...] = jnp.zeros_like(out_ref)

    jj = j_ref[...]          # (te, 1) int32 : source node j per edge
    ii = i_ref[0]            # (1, te) int32 : target node i per edge (lane-major)

    # One-hot gather matrix: gath[e, n] = (j[e] == n)         -> (te, N)
    gath = (jax.lax.broadcasted_iota(jnp.int32, (te, n_nodes), 1) == jj
            ).astype(jnp.float32)
    # Transposed one-hot scatter matrix: scat_t[n, e] = (i[e] == n)   -> (N, te)
    # (padded edges carry the sentinel i == N, so their column is all zero)
    scat_t = (jax.lax.broadcasted_iota(jnp.int32, (n_nodes, te), 0) == ii
              ).astype(jnp.float32)

    # edge_proj: Linear(F -> 3H), fused into the edge kernel.
    rbf_h = jnp.dot(rbf_ref[...], we_ref[...],
                    preferred_element_type=jnp.float32) + be_ref[...]

    # Fused gather of the lane-dense node table [x_h | vec] in ONE MXU matmul.
    gathered = jnp.dot(gath, table_ref[...], preferred_element_type=jnp.float32)
    x_h_j = gathered[:, :3 * H]          # (te, 3H)
    vec_j = gathered[:, 3 * H:]          # (te, 3H) lane-dense: [v0 | v1 | v2]

    xji = x_h_j * rbf_h * inv_sqrt_3
    x1 = xji[:, :H]
    x2 = xji[:, H:2 * H]
    x3 = xji[:, 2 * H:]

    ev = ev_ref[...]                     # (te, 3)
    pieces = [x3]                        # d_x message
    for k in range(3):                   # d_vec messages, lane-dense
        vk = (x1 * vec_j[:, k * H:(k + 1) * H] + x2 * ev[:, k:k + 1]) * inv_sqrt_h
        pieces.append(vk)
    msgs = jnp.concatenate(pieces, axis=-1)   # (te, 4H) = [d_x | dv0 | dv1 | dv2]

    # Scatter-add into the node accumulator with ONE MXU matmul.
    out_ref[...] += jnp.dot(scat_t, msgs, preferred_element_type=jnp.float32)


# --------------------------------------------------------------------------
# Wrapper
# --------------------------------------------------------------------------
@functools.partial(jax.jit, static_argnames=("tile_n", "tile_e"))
def message_passing(x, vec, edge_index, edge_rbf, edge_vector,
                    we_t, be, w1_t, b1, w2_t, b2, *, tile_n=256, tile_e=256):
    """x: (N,H), vec: (N,3,H), edge_index: (2,E) [j;i], edge_rbf: (E,F),
    edge_vector: (E,3). Weights are pre-transposed: y = x @ W_t + b.
    Returns (d_x (N,H), d_vec (N,3,H))."""
    N, H = x.shape
    E, F = edge_rbf.shape
    assert vec.shape == (N, 3, H)
    assert edge_vector.shape == (E, 3)
    assert tile_n % 8 == 0 and tile_e % 8 == 0

    # ---------------- node MLP (x_proj), node-tiled ----------------
    tn = min(tile_n, _round_up(N, 8))
    n_pad = _round_up(N, tn)
    x_p = jnp.pad(x, ((0, n_pad - N), (0, 0))) if n_pad != N else x

    x_h = pl.pallas_call(
        _x_proj_kernel,
        out_shape=jax.ShapeDtypeStruct((n_pad, 3 * H), jnp.float32),
        grid=(n_pad // tn,),
        in_specs=[
            pl.BlockSpec((tn, H), lambda n: (n, 0)),            # x
            pl.BlockSpec((H, H // 2), lambda n: (0, 0)),        # W1^T (resident)
            pl.BlockSpec((1, H // 2), lambda n: (0, 0)),        # b1
            pl.BlockSpec((H // 2, 3 * H), lambda n: (0, 0)),    # W2^T (resident)
            pl.BlockSpec((1, 3 * H), lambda n: (0, 0)),         # b2
        ],
        out_specs=pl.BlockSpec((tn, 3 * H), lambda n: (n, 0)),
        compiler_params=pltpu.CompilerParams(
            dimension_semantics=("parallel",),
            vmem_limit_bytes=32 * 1024 * 1024),
    )(x_p, w1_t, b1.reshape(1, -1), w2_t, b2.reshape(1, -1))
    x_h = x_h[:N]

    # Lane-dense node table: [x_h (3H) | vec flattened (3H)]  -> one gather matmul.
    node_table = jnp.concatenate([x_h, vec.reshape(N, 3 * H)], axis=-1)

    # ---------------- edge messages + scatter, edge-tiled ----------------
    te = min(tile_e, _round_up(E, 8))
    e_pad = _round_up(E, te)
    pe = e_pad - E
    j = edge_index[0].astype(jnp.int32)
    i = edge_index[1].astype(jnp.int32)
    rbf = edge_rbf
    ev = edge_vector
    if pe:
        j = jnp.pad(j, (0, pe))                       # padded edges gather node 0
        i = jnp.pad(i, (0, pe), constant_values=N)    # sentinel: scatters nowhere
        rbf = jnp.pad(rbf, ((0, pe), (0, 0)))
        ev = jnp.pad(ev, ((0, pe), (0, 0)))
    j2 = j.reshape(e_pad, 1)                          # sublane-major (for gather one-hot)
    i3 = i.reshape(e_pad // te, 1, te)                # lane-major (for scatter one-hot)

    kernel = functools.partial(_edge_message_kernel, hidden=H)
    d_out = pl.pallas_call(
        kernel,
        out_shape=jax.ShapeDtypeStruct((N, 4 * H), jnp.float32),
        grid=(e_pad // te,),
        in_specs=[
            pl.BlockSpec((te, 1), lambda e: (e, 0)),            # j  (source)
            pl.BlockSpec((1, 1, te), lambda e: (e, 0, 0)),      # i  (target)
            pl.BlockSpec((te, F), lambda e: (e, 0)),            # edge_rbf
            pl.BlockSpec((te, 3), lambda e: (e, 0)),            # edge_vector
            pl.BlockSpec((N, 6 * H), lambda e: (0, 0)),         # node table (resident)
            pl.BlockSpec((F, 3 * H), lambda e: (0, 0)),         # edge_proj W^T
            pl.BlockSpec((1, 3 * H), lambda e: (0, 0)),         # edge_proj bias
        ],
        out_specs=pl.BlockSpec((N, 4 * H), lambda e: (0, 0)),   # resident accumulator
        compiler_params=pltpu.CompilerParams(
            dimension_semantics=("arbitrary",),                 # reduction over edges
            vmem_limit_bytes=32 * 1024 * 1024),
    )(j2, i3, rbf, ev, node_table, we_t, be.reshape(1, -1))

    d_x = d_out[:, :H]
    d_vec = d_out[:, H:].reshape(N, 3, H)
    return d_x, d_vec


# --------------------------------------------------------------------------
# Reference + demo
# --------------------------------------------------------------------------
def _xavier_uniform(key, shape):
    # shape = (out_features, in_features), matching torch nn.Linear.weight
    fan_out, fan_in = shape
    a = math.sqrt(6.0 / (fan_in + fan_out))
    return jax.random.uniform(key, shape, jnp.float32, minval=-a, maxval=a)


def _reference(x, vec, edge_index, edge_rbf, edge_vector, we_t, be, w1_t, b1, w2_t, b2):
    N, H = x.shape
    j, i = edge_index[0], edge_index[1]
    rbf_h = edge_rbf @ we_t + be
    h = x @ w1_t + b1
    h = jax.nn.silu(h) * (1.0 / 0.6)
    x_h = h @ w2_t + b2
    xji = x_h[j] * rbf_h * (1.0 / math.sqrt(3.0))
    x1, x2, x3 = xji[:, :H], xji[:, H:2 * H], xji[:, 2 * H:]
    vec_ji = (x1[:, None, :] * vec[j] + x2[:, None, :] * edge_vector[:, :, None]) \
        * (1.0 / math.sqrt(float(H)))
    d_vec = jax.ops.segment_sum(vec_ji, i, num_segments=N)
    d_x = jax.ops.segment_sum(x3, i, num_segments=N)
    return d_x, d_vec


if __name__ == "__main__":
    N, H, F, E = 8, 32, 16, 21   # small demo: 8 nodes, hidden=32, 16 rbf feats, 21 edges
    key = jax.random.PRNGKey(0)
    ks = jax.random.split(key, 12)

    x = jax.random.normal(ks[0], (N, H), jnp.float32)
    vec = jax.random.normal(ks[1], (N, 3, H), jnp.float32)
    edge_rbf = jax.random.normal(ks[2], (E, F), jnp.float32)
    edge_vector = jax.random.normal(ks[3], (E, 3), jnp.float32)
    src = jax.random.randint(ks[4], (E,), 0, N, dtype=jnp.int32)   # j
    dst = jax.random.randint(ks[5], (E,), 0, N, dtype=jnp.int32)   # i
    edge_index = jnp.stack([src, dst], axis=0)

    # Parameters, stored transposed as (in, out) for y = x @ W_t + b.
    we_t = _xavier_uniform(ks[6], (3 * H, F)).T            # edge_proj.weight^T  (F, 3H)
    be = 0.1 * jax.random.normal(ks[7], (3 * H,), jnp.float32)
    w1_t = _xavier_uniform(ks[8], (H // 2, H)).T           # x_proj[0].weight^T  (H, H/2)
    b1 = 0.1 * jax.random.normal(ks[9], (H // 2,), jnp.float32)
    w2_t = _xavier_uniform(ks[10], (3 * H, H // 2)).T      # x_proj[2].weight^T  (H/2, 3H)
    b2 = 0.1 * jax.random.normal(ks[11], (3 * H,), jnp.float32)

    # Small tiles for the tiny demo (defaults are 256); tile_e=8 -> 3 edge-grid
    # steps, exercising the accumulation path and the edge padding (21 -> 24).
    d_x, d_vec = message_passing(x, vec, edge_index, edge_rbf, edge_vector,
                                 we_t, be, w1_t, b1, w2_t, b2,
                                 tile_n=8, tile_e=8)
    jax.block_until_ready((d_x, d_vec))

    d_x_ref, d_vec_ref = _reference(x, vec, edge_index, edge_rbf, edge_vector,
                                    we_t, be, w1_t, b1, w2_t, b2)
    assert d_x.shape == (N, H) and d_vec.shape == (N, 3, H)
    assert jnp.allclose(d_x, d_x_ref, atol=2e-4, rtol=2e-4)
    assert jnp.allclose(d_vec, d_vec_ref, atol=2e-4, rtol=2e-4)

    print("KERNEL_OK")
</pallas_src>

<mosaic_0001>
module attributes {stable_mosaic.version = 11 : i64} {
  func.func @_x_proj_kernel(%arg0: i32, %arg1: memref<8x32xf32, #tpu.memory_space<vmem>>, %arg2: memref<32x16xf32, #tpu.memory_space<vmem>>, %arg3: memref<1x16xf32, #tpu.memory_space<vmem>>, %arg4: memref<16x96xf32, #tpu.memory_space<vmem>>, %arg5: memref<1x96xf32, #tpu.memory_space<vmem>>, %arg6: memref<8x96xf32, #tpu.memory_space<vmem>>) attributes {dimension_semantics = [#tpu.dimension_semantics<parallel>], iteration_bounds = array<i64: 1>, scalar_prefetch = 0 : i64, scratch_operands = 0 : i64, tpu.core_type = #tpu.core_type<tc>, window_params = [{transform_indices = @transform_0, window_bounds = array<i64: 8, 32>}, {pipeline_mode = #tpu.pipeline_mode<synchronous>, transform_indices = @transform_1, window_bounds = array<i64: 32, 16>}, {pipeline_mode = #tpu.pipeline_mode<synchronous>, transform_indices = @transform_2, window_bounds = array<i64: 1, 16>}, {pipeline_mode = #tpu.pipeline_mode<synchronous>, transform_indices = @transform_3, window_bounds = array<i64: 16, 96>}, {pipeline_mode = #tpu.pipeline_mode<synchronous>, transform_indices = @transform_4, window_bounds = array<i64: 1, 96>}, {transform_indices = @transform_5, window_bounds = array<i64: 8, 96>}]} {
    %c0 = arith.constant 0 : index
    %c0_0 = arith.constant 0 : index
    %0 = vector.load %arg1[%c0, %c0_0] : memref<8x32xf32, #tpu.memory_space<vmem>>, vector<8x32xf32>
    %c0_1 = arith.constant 0 : index
    %c0_2 = arith.constant 0 : index
    %1 = vector.load %arg2[%c0_1, %c0_2] : memref<32x16xf32, #tpu.memory_space<vmem>>, vector<32x16xf32>
    %cst = arith.constant dense<0.000000e+00> : vector<8x16xf32>
    %2 = tpu.matmul %0, %1, %cst {dimension_numbers = #tpu.dot_dimension_numbers<[1], [0], [0], [1], [0, 0, 1, 1], [], []>} : vector<8x32xf32>, vector<32x16xf32>, vector<8x16xf32> -> vector<8x16xf32>
    %c0_3 = arith.constant 0 : index
    %c0_4 = arith.constant 0 : index
    %3 = vector.load %arg3[%c0_3, %c0_4] : memref<1x16xf32, #tpu.memory_space<vmem>>, vector<1x16xf32>
    %4 = vector.broadcast %3 : vector<1x16xf32> to vector<8x16xf32>
    %5 = arith.addf %2, %4 : vector<8x16xf32>
    %6 = arith.negf %5 : vector<8x16xf32>
    %7 = math.exp %6 : vector<8x16xf32>
    %cst_5 = arith.constant 1.000000e+00 : f32
    %8 = vector.broadcast %cst_5 : f32 to vector<8x16xf32>
    %9 = arith.addf %8, %7 : vector<8x16xf32>
    %10 = arith.divf %8, %9 : vector<8x16xf32>
    %11 = arith.mulf %5, %10 : vector<8x16xf32>
    %cst_6 = arith.constant 1.66666663 : f32
    %12 = vector.broadcast %cst_6 : f32 to vector<8x16xf32>
    %13 = arith.mulf %11, %12 : vector<8x16xf32>
    %c0_7 = arith.constant 0 : index
    %c0_8 = arith.constant 0 : index
    %14 = vector.load %arg4[%c0_7, %c0_8] : memref<16x96xf32, #tpu.memory_space<vmem>>, vector<16x96xf32>
    %cst_9 = arith.constant dense<0.000000e+00> : vector<8x96xf32>
    %15 = tpu.matmul %13, %14, %cst_9 {dimension_numbers = #tpu.dot_dimension_numbers<[1], [0], [0], [1], [0, 0, 1, 1], [], []>} : vector<8x16xf32>, vector<16x96xf32>, vector<8x96xf32> -> vector<8x96xf32>
    %c0_10 = arith.constant 0 : index
    %c0_11 = arith.constant 0 : index
    %16 = vector.load %arg5[%c0_10, %c0_11] : memref<1x96xf32, #tpu.memory_space<vmem>>, vector<1x96xf32>
    %17 = vector.broadcast %16 : vector<1x96xf32> to vector<8x96xf32>
    %18 = arith.addf %15, %17 : vector<8x96xf32>
    %c0_12 = arith.constant 0 : index
    %c0_13 = arith.constant 0 : index
    %19 = vector.load %arg6[%c0_12, %c0_13] : memref<8x96xf32, #tpu.memory_space<vmem>>, vector<8x96xf32>
    tpu.vector_store %arg6[%c0_12, %c0_13], %18 {strides = array<i32>} : memref<8x96xf32, #tpu.memory_space<vmem>>, vector<8x96xf32>,
    return
  }
  func.func @transform_0(%arg0: i32) -> (i32, i32) {
    %c0_i32 = arith.constant 0 : i32
    %c0_i32_0 = arith.constant 0 : i32
    return %arg0, %c0_i32 : i32, i32
  }
  func.func @transform_1(%arg0: i32) -> (i32, i32) {
    %c0_i32 = arith.constant 0 : i32
    %c0_i32_0 = arith.constant 0 : i32
    %c0_i32_1 = arith.constant 0 : i32
    return %c0_i32, %c0_i32_0 : i32, i32
  }
  func.func @transform_2(%arg0: i32) -> (i32, i32) {
    %c0_i32 = arith.constant 0 : i32
    %c0_i32_0 = arith.constant 0 : i32
    %c0_i32_1 = arith.constant 0 : i32
    return %c0_i32, %c0_i32_0 : i32, i32
  }
  func.func @transform_3(%arg0: i32) -> (i32, i32) {
    %c0_i32 = arith.constant 0 : i32
    %c0_i32_0 = arith.constant 0 : i32
    %c0_i32_1 = arith.constant 0 : i32
    return %c0_i32, %c0_i32_0 : i32, i32
  }
  func.func @transform_4(%arg0: i32) -> (i32, i32) {
    %c0_i32 = arith.constant 0 : i32
    %c0_i32_0 = arith.constant 0 : i32
    %c0_i32_1 = arith.constant 0 : i32
    return %c0_i32, %c0_i32_0 : i32, i32
  }
  func.func @transform_5(%arg0: i32) -> (i32, i32) {
    %c0_i32 = arith.constant 0 : i32
    %c0_i32_0 = arith.constant 0 : i32
    return %arg0, %c0_i32 : i32, i32
  }
}

module attributes {stable_mosaic.version = 11 : i64} {
  func.func @_edge_message_kernel(%arg0: i32, %arg1: memref<8x1xi32, #tpu.memory_space<vmem>>, %arg2: memref<1x1x8xi32, #tpu.memory_space<vmem>>, %arg3: memref<8x16xf32, #tpu.memory_space<vmem>>, %arg4: memref<8x3xf32, #tpu.memory_space<vmem>>, %arg5: memref<8x192xf32, #tpu.memory_space<vmem>>, %arg6: memref<16x96xf32, #tpu.memory_space<vmem>>, %arg7: memref<1x96xf32, #tpu.memory_space<vmem>>, %arg8: memref<8x128xf32, #tpu.memory_space<vmem>>) attributes {dimension_semantics = [#tpu.dimension_semantics<arbitrary>], iteration_bounds = array<i64: 3>, scalar_prefetch = 0 : i64, scratch_operands = 0 : i64, tpu.core_type = #tpu.core_type<tc>, window_params = [{transform_indices = @transform_0, window_bounds = array<i64: 8, 1>}, {transform_indices = @transform_1, window_bounds = array<i64: 1, 1, 8>}, {transform_indices = @transform_2, window_bounds = array<i64: 8, 16>}, {transform_indices = @transform_3, window_bounds = array<i64: 8, 3>}, {pipeline_mode = #tpu.pipeline_mode<synchronous>, transform_indices = @transform_4, window_bounds = array<i64: 8, 192>}, {pipeline_mode = #tpu.pipeline_mode<synchronous>, transform_indices = @transform_5, window_bounds = array<i64: 16, 96>}, {pipeline_mode = #tpu.pipeline_mode<synchronous>, transform_indices = @transform_6, window_bounds = array<i64: 1, 96>}, {pipeline_mode = #tpu.pipeline_mode<synchronous>, transform_indices = @transform_7, window_bounds = array<i64: 8, 128>}]} {
    %c0_i32 = arith.constant 0 : i32
    %0 = arith.cmpi eq, %arg0, %c0_i32 : i32
    %1 = arith.extui %0 : i1 to i32
    %c0_i32_0 = arith.constant 0 : i32
    %2 = arith.cmpi ne, %1, %c0_i32_0 : i32
    scf.if %2 {
      %cst_25 = arith.constant 0.000000e+00 : f32
      %62 = vector.broadcast %cst_25 : f32 to vector<8x128xf32>
      %c0_26 = arith.constant 0 : index
      %c0_27 = arith.constant 0 : index
      %63 = vector.load %arg8[%c0_26, %c0_27] : memref<8x128xf32, #tpu.memory_space<vmem>>, vector<8x128xf32>
      tpu.vector_store %arg8[%c0_26, %c0_27], %62 {strides = array<i32>} : memref<8x128xf32, #tpu.memory_space<vmem>>, vector<8x128xf32>,
    } else {
    }
    %c0 = arith.constant 0 : index
    %c0_1 = arith.constant 0 : index
    %3 = vector.load %arg1[%c0, %c0_1] : memref<8x1xi32, #tpu.memory_space<vmem>>, vector<8x1xi32>
    %c0_2 = arith.constant 0 : index
    %c0_3 = arith.constant 0 : index
    %c0_4 = arith.constant 0 : index
    %4 = vector.load %arg2[%c0_2, %c0_3, %c0_4] : memref<1x1x8xi32, #tpu.memory_space<vmem>>, vector<1x1x8xi32>
    %5 = vector.shape_cast %4 : vector<1x1x8xi32> to vector<1x8xi32>
    %6 = tpu.iota {dimensions = array<i32: 1>} : vector<8x8xi32>
    %7 = vector.broadcast %3 : vector<8x1xi32> to vector<8x8xi32>
    %8 = arith.cmpi eq, %6, %7 : vector<8x8xi32>
    %9 = arith.extui %8 : vector<8x8xi1> to vector<8x8xi32>
    %10 = arith.sitofp %9 : vector<8x8xi32> to vector<8x8xf32>
    %11 = tpu.iota {dimensions = array<i32: 0>} : vector<8x8xi32>
    %12 = vector.broadcast %5 : vector<1x8xi32> to vector<8x8xi32>
    %13 = arith.cmpi eq, %11, %12 : vector<8x8xi32>
    %14 = arith.extui %13 : vector<8x8xi1> to vector<8x8xi32>
    %15 = arith.sitofp %14 : vector<8x8xi32> to vector<8x8xf32>
    %c0_5 = arith.constant 0 : index
    %c0_6 = arith.constant 0 : index
    %16 = vector.load %arg3[%c0_5, %c0_6] : memref<8x16xf32, #tpu.memory_space<vmem>>, vector<8x16xf32>
    %c0_7 = arith.constant 0 : index
    %c0_8 = arith.constant 0 : index
    %17 = vector.load %arg6[%c0_7, %c0_8] : memref<16x96xf32, #tpu.memory_space<vmem>>, vector<16x96xf32>
    %cst = arith.constant dense<0.000000e+00> : vector<8x96xf32>
    %18 = tpu.matmul %16, %17, %cst {dimension_numbers = #tpu.dot_dimension_numbers<[1], [0], [0], [1], [0, 0, 1, 1], [], []>} : vector<8x16xf32>, vector<16x96xf32>, vector<8x96xf32> -> vector<8x96xf32>
    %c0_9 = arith.constant 0 : index
    %c0_10 = arith.constant 0 : index
    %19 = vector.load %arg7[%c0_9, %c0_10] : memref<1x96xf32, #tpu.memory_space<vmem>>, vector<1x96xf32>
    %20 = vector.broadcast %19 : vector<1x96xf32> to vector<8x96xf32>
    %21 = arith.addf %18, %20 : vector<8x96xf32>
    %c0_11 = arith.constant 0 : index
    %c0_12 = arith.constant 0 : index
    %22 = vector.load %arg5[%c0_11, %c0_12] : memref<8x192xf32, #tpu.memory_space<vmem>>, vector<8x192xf32>
    %cst_13 = arith.constant dense<0.000000e+00> : vector<8x192xf32>
    %23 = tpu.matmul %10, %22, %cst_13 {dimension_numbers = #tpu.dot_dimension_numbers<[1], [0], [0], [1], [0, 0, 1, 1], [], []>} : vector<8x8xf32>, vector<8x192xf32>, vector<8x192xf32> -> vector<8x192xf32>
    %24 = vector.extract_strided_slice %23 {offsets = [0, 0], sizes = [8, 96], strides = [1, 1]} : vector<8x192xf32> to vector<8x96xf32>
    %25 = vector.extract_strided_slice %23 {offsets = [0, 96], sizes = [8, 96], strides = [1, 1]} : vector<8x192xf32> to vector<8x96xf32>
    %26 = arith.mulf %24, %21 : vector<8x96xf32>
    %cst_14 = arith.constant 0.577350259 : f32
    %27 = vector.broadcast %cst_14 : f32 to vector<8x96xf32>
    %28 = arith.mulf %26, %27 : vector<8x96xf32>
    %29 = vector.extract_strided_slice %28 {offsets = [0, 0], sizes = [8, 32], strides = [1, 1]} : vector<8x96xf32> to vector<8x32xf32>
    %30 = vector.extract_strided_slice %28 {offsets = [0, 32], sizes = [8, 32], strides = [1, 1]} : vector<8x96xf32> to vector<8x32xf32>
    %31 = vector.extract_strided_slice %28 {offsets = [0, 64], sizes = [8, 32], strides = [1, 1]} : vector<8x96xf32> to vector<8x32xf32>
    %c0_15 = arith.constant 0 : index
    %c0_16 = arith.constant 0 : index
    %32 = vector.load %arg4[%c0_15, %c0_16] : memref<8x3xf32, #tpu.memory_space<vmem>>, vector<8x3xf32>
    %33 = vector.extract_strided_slice %25 {offsets = [0, 0], sizes = [8, 32], strides = [1, 1]} : vector<8x96xf32> to vector<8x32xf32>
    %34 = arith.mulf %29, %33 : vector<8x32xf32>
    %35 = vector.extract_strided_slice %32 {offsets = [0, 0], sizes = [8, 1], strides = [1, 1]} : vector<8x3xf32> to vector<8x1xf32>
    %36 = vector.broadcast %35 : vector<8x1xf32> to vector<8x32xf32>
    %37 = arith.mulf %30, %36 : vector<8x32xf32>
    %38 = arith.addf %34, %37 : vector<8x32xf32>
    %cst_17 = arith.constant 0.176776692 : f32
    %39 = vector.broadcast %cst_17 : f32 to vector<8x32xf32>
    %40 = arith.mulf %38, %39 : vector<8x32xf32>
    %41 = vector.extract_strided_slice %25 {offsets = [0, 32], sizes = [8, 32], strides = [1, 1]} : vector<8x96xf32> to vector<8x32xf32>
    %42 = arith.mulf %29, %41 : vector<8x32xf32>
    %43 = vector.extract_strided_slice %32 {offsets = [0, 1], sizes = [8, 1], strides = [1, 1]} : vector<8x3xf32> to vector<8x1xf32>
    %44 = vector.broadcast %43 : vector<8x1xf32> to vector<8x32xf32>
    %45 = arith.mulf %30, %44 : vector<8x32xf32>
    %46 = arith.addf %42, %45 : vector<8x32xf32>
    %cst_18 = arith.constant 0.176776692 : f32
    %47 = vector.broadcast %cst_18 : f32 to vector<8x32xf32>
    %48 = arith.mulf %46, %47 : vector<8x32xf32>
    %49 = vector.extract_strided_slice %25 {offsets = [0, 64], sizes = [8, 32], strides = [1, 1]} : vector<8x96xf32> to vector<8x32xf32>
    %50 = arith.mulf %29, %49 : vector<8x32xf32>
    %51 = vector.extract_strided_slice %32 {offsets = [0, 2], sizes = [8, 1], strides = [1, 1]} : vector<8x3xf32> to vector<8x1xf32>
    %52 = vector.broadcast %51 : vector<8x1xf32> to vector<8x32xf32>
    %53 = arith.mulf %30, %52 : vector<8x32xf32>
    %54 = arith.addf %50, %53 : vector<8x32xf32>
    %cst_19 = arith.constant 0.176776692 : f32
    %55 = vector.broadcast %cst_19 : f32 to vector<8x32xf32>
    %56 = arith.mulf %54, %55 : vector<8x32xf32>
    %57 = tpu.concatenate %31, %40, %48, %56 in 1 : vector<8x32xf32>, vector<8x32xf32>, vector<8x32xf32>, vector<8x32xf32> -> vector<8x128xf32>
    %c0_20 = arith.constant 0 : index
    %c0_21 = arith.constant 0 : index
    %58 = vector.load %arg8[%c0_20, %c0_21] : memref<8x128xf32, #tpu.memory_space<vmem>>, vector<8x128xf32>
    %cst_22 = arith.constant dense<0.000000e+00> : vector<8x128xf32>
    %59 = tpu.matmul %15, %57, %cst_22 {dimension_numbers = #tpu.dot_dimension_numbers<[1], [0], [0], [1], [0, 0, 1, 1], [], []>} : vector<8x8xf32>, vector<8x128xf32>, vector<8x128xf32> -> vector<8x128xf32>
    %60 = arith.addf %58, %59 : vector<8x128xf32>
    %c0_23 = arith.constant 0 : index
    %c0_24 = arith.constant 0 : index
    %61 = vector.load %arg8[%c0_23, %c0_24] : memref<8x128xf32, #tpu.memory_space<vmem>>, vector<8x128xf32>
    tpu.vector_store %arg8[%c0_23, %c0_24], %60 {strides = array<i32>} : memref<8x128xf32, #tpu.memory_space<vmem>>, vector<8x128xf32>,
    return
  }
  func.func @transform_0(%arg0: i32) -> (i32, i32) {
    %c0_i32 = arith.constant 0 : i32
    %c0_i32_0 = arith.constant 0 : i32
    return %arg0, %c0_i32 : i32, i32
  }
  func.func @transform_1(%arg0: i32) -> (i32, i32, i32) {
    %c0_i32 = arith.constant 0 : i32
    %c0_i32_0 = arith.constant 0 : i32
    %c0_i32_1 = arith.constant 0 : i32
    return %arg0, %c0_i32, %c0_i32_0 : i32, i32, i32
  }
  func.func @transform_2(%arg0: i32) -> (i32, i32) {
    %c0_i32 = arith.constant 0 : i32
    %c0_i32_0 = arith.constant 0 : i32
    return %arg0, %c0_i32 : i32, i32
  }
  func.func @transform_3(%arg0: i32) -> (i32, i32) {
    %c0_i32 = arith.constant 0 : i32
    %c0_i32_0 = arith.constant 0 : i32
    return %arg0, %c0_i32 : i32, i32
  }
  func.func @transform_4(%arg0: i32) -> (i32, i32) {
    %c0_i32 = arith.constant 0 : i32
    %c0_i32_0 = arith.constant 0 : i32
    %c0_i32_1 = arith.constant 0 : i32
    return %c0_i32, %c0_i32_0 : i32, i32
  }
  func.func @transform_5(%arg0: i32) -> (i32, i32) {
    %c0_i32 = arith.constant 0 : i32
    %c0_i32_0 = arith.constant 0 : i32
    %c0_i32_1 = arith.constant 0 : i32
    return %c0_i32, %c0_i32_0 : i32, i32
  }
  func.func @transform_6(%arg0: i32) -> (i32, i32) {
    %c0_i32 = arith.constant 0 : i32
    %c0_i32_0 = arith.constant 0 : i32
    %c0_i32_1 = arith.constant 0 : i32
    return %c0_i32, %c0_i32_0 : i32, i32
  }
  func.func @transform_7(%arg0: i32) -> (i32, i32) {
    %c0_i32 = arith.constant 0 : i32
    %c0_i32_0 = arith.constant 0 : i32
    %c0_i32_1 = arith.constant 0 : i32
    return %c0_i32, %c0_i32_0 : i32, i32
  }
}

</mosaic_0001>

<llo_original>
// kernel: message_passing.2
$region0: #{message_passing.2}
  #allocation0 [shape = 'u32[]', space=smem, size = 0x4, offset = 0x4, fixed_abs, tag = 'smem constant byte address 0x4 - core index']
  #allocation1 [shape = 'u32[144,128]{1,0:T(1,128)}', space=vmem, size = 0x12000, scoped, tag = 'internal scratch']
  %s0 = inlined_call_operand.vmem [shape: f32[8,32], index: 0, kind: input, shape index: {}]
  %s1 = inlined_call_operand.vmem [shape: f32[32,16], index: 1, kind: input, shape index: {}]
  %s2 = inlined_call_operand.vmem [shape: f32[1,16], index: 2, kind: input, shape index: {}]
  %s3 = inlined_call_operand.vmem [shape: f32[16,96], index: 3, kind: input, shape index: {}]
  %s4 = inlined_call_operand.vmem [shape: f32[1,96], index: 4, kind: input, shape index: {}]
  %s5 = inlined_call_operand.vmem [shape: f32[8,96], index: 5, kind: output, shape index: {}]
  %s6 = sld [smem:[#allocation0]]
  $region30: #{message_passing.2} parent=0
    _
  %s8 = ssub.s32 1, %s6
  %s9 = scalar_select 0, %s8, %s6
  // Predicated region
  $region2: #{message_passing.2} parent=0 // pred_check
    _
  $region3: #{message_passing.2} parent=0 // pred_check_branch
    %11 = sbr.rel (0) target = $region5
  $region4: #{message_passing.2} parent=0 // pred_region
    _
  $region5: #{message_passing.2} parent=0 // pred_fallthru
    _
  // Predicated region
  $region6: #{message_passing.2} parent=0 // pred_check
    _
  $region7: #{message_passing.2} parent=0 // pred_check_branch
    %13 = sbr.rel (0) target = $region9
  $region8: #{message_passing.2} parent=0 // pred_region
    _
  $region9: #{message_passing.2} parent=0 // pred_fallthru
    _
  // Predicated region
  $region10: #{message_passing.2} parent=0 // pred_check
    _
  $region11: #{message_passing.2} parent=0 // pred_check_branch
    %15 = sbr.rel (0) target = $region13
  $region12: #{message_passing.2} parent=0 // pred_region
    _
  $region13: #{message_passing.2} parent=0 // pred_fallthru
    _
  // Predicated region
  $region14: #{message_passing.2} parent=0 // pred_check
    _
  $region15: #{message_passing.2} parent=0 // pred_check_branch
    %17 = sbr.rel (0) target = $region17
  $region16: #{message_passing.2} parent=0 // pred_region
    _
  $region17: #{message_passing.2} parent=0 // pred_fallthru
    _
  // Predicated region
  $region18: #{message_passing.2} parent=0 // pred_check
    _
  $region19: #{message_passing.2} parent=0 // pred_check_branch
    %19 = sbr.rel (0) target = $region21
  $region20: #{message_passing.2} parent=0 // pred_region
    _
  $region21: #{message_passing.2} parent=0 // pred_fallthru
    _
  %v20 = vld [vmem:[%s0] sm:$0xff]
  %v21 = vld [vmem:[%s1] sm:$0xff]
  %v22 = vld [vmem:[%s1 + $0x8] sm:$0xff]
  %v23 = vld [vmem:[%s1 + $0x10] sm:$0xff]
  %v24 = vld [vmem:[%s1 + $0x18] sm:$0xff]
  %v25 = vld [vmem:[%s2] sm:$0x1]
  %v27 = vlaneseq
  %v28 = vshrl.u32 %v27, 7
  %v29 = vsub.s32 0, %v28
  %v30 = vrot.slane %v25, %v29
  %vm32 = vcmask 261120
  %v34 = vsel %vm32, %v20, 0
  %36 = vmatprep.subr.mxu0 0.0
  %37 = vmatpush1.msra.mxu0 %v21
  %38 = vmatprep.subr.mxu0 0.0
  %39 = vmatpush1.msra.mxu0 %v22
  %40 = vmatprep.subr.mxu0 0.0
  %41 = vmatpush1.msra.mxu0 %v23
  %42 = vmatprep.subr.mxu0 0.0
  %43 = vmatpush1.msra.mxu0 %v24
  %44 = vmatprep.subr.mxu0 0.0
  %45 = vmatpush1.msra.mxu0 0.0
  %46 = vmatprep.subr.mxu0 0.0
  %47 = vmatpush1.msra.mxu0 0.0
  %48 = vmatprep.subr.mxu0 0.0
  %49 = vmatpush1.msra.mxu0 0.0
  %50 = vmatprep.subr.mxu0 0.0
  %51 = vmatpush1.msra.mxu0 0.0
  %52 = vmatprep.subr.mxu0 0.0
  %53 = vmatpush1.msra.mxu0 0.0
  %54 = vmatprep.subr.mxu0 0.0
  %55 = vmatpush1.msra.mxu0 0.0
  %56 = vmatprep.subr.mxu0 0.0
  %57 = vmatpush1.msra.mxu0 0.0
  %58 = vmatprep.subr.mxu0 0.0
  %59 = vmatpush1.msra.mxu0 0.0
  %60 = vmatprep.subr.mxu0 0.0
  %61 = vmatpush1.msra.mxu0 0.0
  %62 = vmatprep.subr.mxu0 0.0
  %63 = vmatpush1.msra.mxu0 0.0
  %64 = vmatprep.subr.mxu0 0.0
  %65 = vmatpush1.msra.mxu0 0.0
  %66 = vmatprep.subr.mxu0 0.0
  %67 = vmatpush1.msra.mxu0 0.0
  %68 = vmatprep.subr.mxu0 0.0
  %69 = vmatpush1.msra.mxu0 0.0
  %70 = vmatprep.subr.mxu0 0.0
  %71 = vmatpush1.msra.mxu0 0.0
  %72 = vmatprep.subr.mxu0 0.0
  %73 = vmatpush1.msra.mxu0 0.0
  %74 = vmatprep.subr.mxu0 0.0
  %75 = vmatpush1.msra.mxu0 0.0
  %76 = vmatprep.subr.mxu0 0.0
  %77 = vmatpush1.msra.mxu0 0.0
  %78 = vmatprep.subr.mxu0 0.0
  %79 = vmatpush1.msra.mxu0 0.0
  %80 = vmatprep.subr.mxu0 0.0
  %81 = vmatpush1.msra.mxu0 0.0
  %82 = vmatprep.subr.mxu0 0.0
  %83 = vmatpush1.msra.mxu0 0.0
  %84 = vmatprep.subr.mxu0 0.0
  %85 = vmatpush1.msra.mxu0 0.0
  %86 = vmatprep.subr.mxu0 0.0
  %87 = vmatpush1.msra.mxu0 0.0
  %88 = vmatprep.subr.mxu0 0.0
  %89 = vmatpush1.msra.mxu0 0.0
  %90 = vmatprep.subr.mxu0 0.0
  %91 = vmatpush1.msra.mxu0 0.0
  %92 = vmatprep.subr.mxu0 0.0
  %93 = vmatpush1.msra.mxu0 0.0
  %94 = vmatprep.subr.mxu0 0.0
  %95 = vmatpush1.msra.mxu0 0.0
  %96 = vmatprep.subr.mxu0 0.0
  %97 = vmatpush1.msra.mxu0 0.0
  %98 = vmatprep.subr.mxu0 0.0
  %99 = vmatpush1.msra.mxu0 0.0
  %100 = vmatprep.mubr.f32.mxu0 0.0
  %101 = vmatmul.mubr.f32.gmra.mrb[0].mxu0 %v34
  %v102 = vpop.f32.mrb[0].mxu0
  %v103 = vadd.f32 %v30, %v102
  %v104 = vpop.f32.mrb[0].mxu0
  %105 = vdwg.mxu0
  %v106 = vxor.u32 %v103, 2147483648
  %v107 = vmul.f32 %v106, 1.442695
  %v108 = vpow.pop %v107
  %v109 = vadd.f32 %v108, 1.0
  %v110 = vrcp.pop %v109
  %v111 = vmul.f32 1.0, %v110
  %v112 = vmul.f32 %v103, %v111
  %v113 = vmul.f32 %v112, 1.6666666
  %v114 = vld [vmem:[%s3] sm:$0xff]
  %v115 = vld [vmem:[%s3 + $0x8] sm:$0xff]
  %v116 = vld [vmem:[%s4] sm:$0x1]
  %v118 = vlaneseq
  %v119 = vshrl.u32 %v118, 7
  %v120 = vsub.s32 0, %v119
  %v121 = vrot.slane %v116, %v120
  %vm123 = vcmask 130048
  %v125 = vsel %vm123, %v113, 0
  %127 = vmatprep.subr.mxu0 0.0
  %128 = vmatpush1.msra.mxu0 %v114
  %129 = vmatprep.subr.mxu0 0.0
  %130 = vmatpush1.msra.mxu0 %v115
  %131 = vmatprep.subr.mxu0 0.0
  %132 = vmatpush1.msra.mxu0 0.0
  %133 = vmatprep.subr.mxu0 0.0
  %134 = vmatpush1.msra.mxu0 0.0
  %135 = vmatprep.subr.mxu0 0.0
  %136 = vmatpush1.msra.mxu0 0.0
  %137 = vmatprep.subr.mxu0 0.0
  %138 = vmatpush1.msra.mxu0 0.0
  %139 = vmatprep.subr.mxu0 0.0
  %140 = vmatpush1.msra.mxu0 0.0
  %141 = vmatprep.subr.mxu0 0.0
  %142 = vmatpush1.msra.mxu0 0.0
  %143 = vmatprep.subr.mxu0 0.0
  %144 = vmatpush1.msra.mxu0 0.0
  %145 = vmatprep.subr.mxu0 0.0
  %146 = vmatpush1.msra.mxu0 0.0
  %147 = vmatprep.subr.mxu0 0.0
  %148 = vmatpush1.msra.mxu0 0.0
  %149 = vmatprep.subr.mxu0 0.0
  %150 = vmatpush1.msra.mxu0 0.0
  %151 = vmatprep.subr.mxu0 0.0
  %152 = vmatpush1.msra.mxu0 0.0
  %153 = vmatprep.subr.mxu0 0.0
  %154 = vmatpush1.msra.mxu0 0.0
  %155 = vmatprep.subr.mxu0 0.0
  %156 = vmatpush1.msra.mxu0 0.0
  %157 = vmatprep.subr.mxu0 0.0
  %158 = vmatpush1.msra.mxu0 0.0
  %159 = vmatprep.subr.mxu0 0.0
  %160 = vmatpush1.msra.mxu0 0.0
  %161 = vmatprep.subr.mxu0 0.0
  %162 = vmatpush1.msra.mxu0 0.0
  %163 = vmatprep.subr.mxu0 0.0
  %164 = vmatpush1.msra.mxu0 0.0
  %165 = vmatprep.subr.mxu0 0.0
  %166 = vmatpush1.msra.mxu0 0.0
  %167 = vmatprep.subr.mxu0 0.0
  %168 = vmatpush1.msra.mxu0 0.0
  %169 = vmatprep.subr.mxu0 0.0
  %170 = vmatpush1.msra.mxu0 0.0
  %171 = vmatprep.subr.mxu0 0.0
  %172 = vmatpush1.msra.mxu0 0.0
  %173 = vmatprep.subr.mxu0 0.0
  %174 = vmatpush1.msra.mxu0 0.0
  %175 = vmatprep.subr.mxu0 0.0
  %176 = vmatpush1.msra.mxu0 0.0
  %177 = vmatprep.subr.mxu0 0.0
  %178 = vmatpush1.msra.mxu0 0.0
  %179 = vmatprep.subr.mxu0 0.0
  %180 = vmatpush1.msra.mxu0 0.0
  %181 = vmatprep.subr.mxu0 0.0
  %182 = vmatpush1.msra.mxu0 0.0
  %183 = vmatprep.subr.mxu0 0.0
  %184 = vmatpush1.msra.mxu0 0.0
  %185 = vmatprep.subr.mxu0 0.0
  %186 = vmatpush1.msra.mxu0 0.0
  %187 = vmatprep.subr.mxu0 0.0
  %188 = vmatpush1.msra.mxu0 0.0
  %189 = vmatprep.subr.mxu0 0.0
  %190 = vmatpush1.msra.mxu0 0.0
  %191 = vmatprep.mubr.f32.mxu0 0.0
  %192 = vmatmul.mubr.f32.gmra.mrb[0].mxu0 %v125
  %v193 = vpop.f32.mrb[0].mxu0
  %v194 = vadd.f32 %v121, %v193
  %v195 = vpop.f32.mrb[0].mxu0
  %196 = vdwg.mxu0
  %vm197 = vcmask 785408
  %198 = vst.msk [vmem:[%s5] sm:$0xff] %vm197, %v194
  // Predicated region
  $region22: #{message_passing.2} parent=0 // pred_check
    _
  $region23: #{message_passing.2} parent=0 // pred_check_branch
    %200 = sbr.rel (0) target = $region25
  $region24: #{message_passing.2} parent=0 // pred_region
    _
  $region25: #{message_passing.2} parent=0 // pred_fallthru
    _
  // Predicated region
  $region26: #{message_passing.2} parent=0 // pred_check
    _
  $region27: #{message_passing.2} parent=0 // pred_check_branch
    %202 = sbr.rel (0) target = $region29
  $region28: #{message_passing.2} parent=0 // pred_region
    _
  $region29: #{message_passing.2} parent=0 // pred_fallthru
    _

// kernel: message_passing.3
$region0: #{message_passing.3}
  #allocation0 [shape = 'u32[]', space=smem, size = 0x4, offset = 0x4, fixed_abs, tag = 'smem constant byte address 0x4 - core index']
  #allocation1 [shape = 'u32[144,128]{1,0:T(1,128)}', space=vmem, size = 0x12000, scoped, tag = 'internal scratch']
  %s0 = inlined_call_operand.vmem [shape: s32[24,1], index: 0, kind: input, shape index: {}]
  %s1 = inlined_call_operand.vmem [shape: s32[3,1,8], index: 1, kind: input, shape index: {}]
  %s2 = inlined_call_operand.vmem [shape: f32[24,16], index: 2, kind: input, shape index: {}]
  %s3 = inlined_call_operand.vmem [shape: f32[24,3], index: 3, kind: input, shape index: {}]
  %s4 = inlined_call_operand.vmem [shape: f32[8,192], index: 4, kind: input, shape index: {}]
  %s5 = inlined_call_operand.vmem [shape: f32[16,96], index: 5, kind: input, shape index: {}]
  %s6 = inlined_call_operand.vmem [shape: f32[1,96], index: 6, kind: input, shape index: {}]
  %s7 = inlined_call_operand.vmem [shape: f32[8,128], index: 7, kind: output, shape index: {}]
  %s8 = sld [smem:[#allocation0]]
  $region65: #{message_passing.3} parent=0
    _
  %s10 = ssub.s32 1, %s8
  %s11 = scalar_select 0, %s10, %s8
  loop: start=0, step=1, limit=5
  $region2: #{message_passing.3} parent=0 // loop_pre_header
    _
  $region3: #{message_passing.3} parent=0 // loop_header
    %s13 = sphi 0, %s17
    %p14 = scmp.ge.s32.totalorder %s13, 5
    %s23 = sphi 0, %s25
    %s26 = sphi 0, %s23
    %s27 = sphi 0, %s26
    %s43 = sphi 0, %s27
    %s49 = sphi 0, %s51
    %s52 = sphi 0, %s49
    %s53 = sphi 0, %s52
    %s69 = sphi 0, %s53
    %s75 = sphi 0, %s77
    %s78 = sphi 0, %s75
    %s79 = sphi 0, %s78
    %s95 = sphi 0, %s79
    %s101 = sphi 0, %s103
    %s104 = sphi 0, %s101
    %s105 = sphi 0, %s104
    %s121 = sphi 0, %s105
    %s125 = sphi 0, %s125
    %s127 = sphi 0, %s125
    %s128 = sphi 0, %s127
    %s142 = sphi 0, %s128
    %s146 = sphi 0, %s146
    %s148 = sphi 0, %s146
    %s149 = sphi 0, %s148
    %s163 = sphi 0, %s149
    %s167 = sphi 0, %s167
    %s169 = sphi 0, %s167
    %s170 = sphi 0, %s169
    %s184 = sphi 0, %s170
    %s188 = sphi 0, %s188
    %s190 = sphi 0, %s188
    %s191 = sphi 0, %s190
    %s205 = sphi 0, %s191
  $region4: #{message_passing.3} parent=0 // loop_header_branch
    %16 = sbr.rel (%p14) target = $region8
  $region5: #{message_passing.3} parent=0 // loop_body
    %s18 = ssub.s32 %s13, 1
    %s19 = ssub.s32 %s13, 2
    %s20 = sadd.s32 %s13, 1
    %s21 = ssub.s32 %s13, %s20
    %p22 = scmp.eq.s32.totalorder %s21, 0
    %s24 = sadd.s32 %s23, 1
    %s25 = scalar_select %p22, %s23, %s24
    %p28 = pneg %p22
    %p29 = scmp.eq.s32.totalorder %s13, 2
    %p30 = por %p28, %p29
    %p31 = scmp.ne.s32.totalorder %s23, %s26
    %p32 = scmp.eq.s32.totalorder %s13, 0
    %p33 = por %p31, %p32
    %p34 = scmp.ne.s32.totalorder %s23, %s26
    %p35 = scmp.eq.s32.totalorder %s18, 2
    %p36 = por %p34, %p35
    %p37 = scmp.ne.s32.totalorder %s26, %s27
    %p38 = scmp.eq.s32.totalorder %s18, 0
    %p39 = por %p37, %p38
    %p40 = scmp.ne.s32.totalorder %s26, %s27
    %p41 = scmp.eq.s32.totalorder %s19, 2
    %p42 = por %p40, %p41
    %p44 = scmp.ne.s32.totalorder %s27, %s43
    %p45 = scmp.eq.s32.totalorder %s19, 0
    %p46 = por %p44, %p45
    %s47 = ssub.s32 %s13, %s20
    %p48 = scmp.eq.s32.totalorder %s47, 0
    %s50 = sadd.s32 %s49, 1
    %s51 = scalar_select %p48, %s49, %s50
    %p54 = pneg %p48
    %p55 = scmp.eq.s32.totalorder %s13, 2
    %p56 = por %p54, %p55
    %p57 = scmp.ne.s32.totalorder %s49, %s52
    %p58 = scmp.eq.s32.totalorder %s13, 0
    %p59 = por %p57, %p58
    %p60 = scmp.ne.s32.totalorder %s49, %s52
    %p61 = scmp.eq.s32.totalorder %s18, 2
    %p62 = por %p60, %p61
    %p63 = scmp.ne.s32.totalorder %s52, %s53
    %p64 = scmp.eq.s32.totalorder %s18, 0
    %p65 = por %p63, %p64
    %p66 = scmp.ne.s32.totalorder %s52, %s53
    %p67 = scmp.eq.s32.totalorder %s19, 2
    %p68 = por %p66, %p67
    %p70 = scmp.ne.s32.totalorder %s53, %s69
    %p71 = scmp.eq.s32.totalorder %s19, 0
    %p72 = por %p70, %p71
    %s73 = ssub.s32 %s13, %s20
    %p74 = scmp.eq.s32.totalorder %s73, 0
    %s76 = sadd.s32 %s75, 1
    %s77 = scalar_select %p74, %s75, %s76
    %p80 = pneg %p74
    %p81 = scmp.eq.s32.totalorder %s13, 2
    %p82 = por %p80, %p81
    %p83 = scmp.ne.s32.totalorder %s75, %s78
    %p84 = scmp.eq.s32.totalorder %s13, 0
    %p85 = por %p83, %p84
    %p86 = scmp.ne.s32.totalorder %s75, %s78
    %p87 = scmp.eq.s32.totalorder %s18, 2
    %p88 = por %p86, %p87
    %p89 = scmp.ne.s32.totalorder %s78, %s79
    %p90 = scmp.eq.s32.totalorder %s18, 0
    %p91 = por %p89, %p90
    %p92 = scmp.ne.s32.totalorder %s78, %s79
    %p93 = scmp.eq.s32.totalorder %s19, 2
    %p94 = por %p92, %p93
    %p96 = scmp.ne.s32.totalorder %s79, %s95
    %p97 = scmp.eq.s32.totalorder %s19, 0
    %p98 = por %p96, %p97
    %s99 = ssub.s32 %s13, %s20
    %p100 = scmp.eq.s32.totalorder %s99, 0
    %s102 = sadd.s32 %s101, 1
    %s103 = scalar_select %p100, %s101, %s102
    %p106 = pneg %p100
    %p107 = scmp.eq.s32.totalorder %s13, 2
    %p108 = por %p106, %p107
    %p109 = scmp.ne.s32.totalorder %s101, %s104
    %p110 = scmp.eq.s32.totalorder %s13, 0
    %p111 = por %p109, %p110
    %p112 = scmp.ne.s32.totalorder %s101, %s104
    %p113 = scmp.eq.s32.totalorder %s18, 2
    %p114 = por %p112, %p113
    %p115 = scmp.ne.s32.totalorder %s104, %s105
    %p116 = scmp.eq.s32.totalorder %s18, 0
    %p117 = por %p115, %p116
    %p118 = scmp.ne.s32.totalorder %s104, %s105
    %p119 = scmp.eq.s32.totalorder %s19, 2
    %p120 = por %p118, %p119
    %p122 = scmp.ne.s32.totalorder %s105, %s121
    %p123 = scmp.eq.s32.totalorder %s19, 0
    %p124 = por %p122, %p123
    %s126 = sadd.s32 %s125, 1
    %p129 = scmp.eq.s32.totalorder %s13, 2
    %p130 = scmp.ne.s32.totalorder %s125, %s127
    %p131 = scmp.eq.s32.totalorder %s13, 0
    %p132 = por %p130, %p131
    %p133 = scmp.ne.s32.totalorder %s125, %s127
    %p134 = scmp.eq.s32.totalorder %s18, 2
    %p135 = por %p133, %p134
    %p136 = scmp.ne.s32.totalorder %s127, %s128
    %p137 = scmp.eq.s32.totalorder %s18, 0
    %p138 = por %p136, %p137
    %p139 = scmp.ne.s32.totalorder %s127, %s128
    %p140 = scmp.eq.s32.totalorder %s19, 2
    %p141 = por %p139, %p140
    %p143 = scmp.ne.s32.totalorder %s128, %s142
    %p144 = scmp.eq.s32.totalorder %s19, 0
    %p145 = por %p143, %p144
    %s147 = sadd.s32 %s146, 1
    %p150 = scmp.eq.s32.totalorder %s13, 2
    %p151 = scmp.ne.s32.totalorder %s146, %s148
    %p152 = scmp.eq.s32.totalorder %s13, 0
    %p153 = por %p151, %p152
    %p154 = scmp.ne.s32.totalorder %s146, %s148
    %p155 = scmp.eq.s32.totalorder %s18, 2
    %p156 = por %p154, %p155
    %p157 = scmp.ne.s32.totalorder %s148, %s149
    %p158 = scmp.eq.s32.totalorder %s18, 0
    %p159 = por %p157, %p158
    %p160 = scmp.ne.s32.totalorder %s148, %s149
    %p161 = scmp.eq.s32.totalorder %s19, 2
    %p162 = por %p160, %p161
    %p164 = scmp.ne.s32.totalorder %s149, %s163
    %p165 = scmp.eq.s32.totalorder %s19, 0
    %p166 = por %p164, %p165
    %s168 = sadd.s32 %s167, 1
    %p171 = scmp.eq.s32.totalorder %s13, 2
    %p172 = scmp.ne.s32.totalorder %s167, %s169
    %p173 = scmp.eq.s32.totalorder %s13, 0
    %p174 = por %p172, %p173
    %p175 = scmp.ne.s32.totalorder %s167, %s169
    %p176 = scmp.eq.s32.totalorder %s18, 2
    %p177 = por %p175, %p176
    %p178 = scmp.ne.s32.totalorder %s169, %s170
    %p179 = scmp.eq.s32.totalorder %s18, 0
    %p180 = por %p178, %p179
    %p181 = scmp.ne.s32.totalorder %s169, %s170
    %p182 = scmp.eq.s32.totalorder %s19, 2
    %p183 = por %p181, %p182
    %p185 = scmp.ne.s32.totalorder %s170, %s184
    %p186 = scmp.eq.s32.totalorder %s19, 0
    %p187 = por %p185, %p186
    %s189 = sadd.s32 %s188, 1
    %p192 = scmp.eq.s32.totalorder %s13, 2
    %p193 = scmp.ne.s32.totalorder %s188, %s190
    %p194 = scmp.eq.s32.totalorder %s13, 0
    %p195 = por %p193, %p194
    %p196 = scmp.ne.s32.totalorder %s188, %s190
    %p197 = scmp.eq.s32.totalorder %s18, 2
    %p198 = por %p196, %p197
    %p199 = scmp.ne.s32.totalorder %s190, %s191
    %p200 = scmp.eq.s32.totalorder %s18, 0
    %p201 = por %p199, %p200
    %p202 = scmp.ne.s32.totalorder %s190, %s191
    %p203 = scmp.eq.s32.totalorder %s19, 2
    %p204 = por %p202, %p203
    %p206 = scmp.ne.s32.totalorder %s191, %s205
    %p207 = scmp.eq.s32.totalorder %s19, 0
    %p208 = por %p206, %p207
    %p209 = scmp.le.s32.totalorder 1, %s13
    %p210 = scmp.lt.s32.totalorder %s13, 4
    %p211 = pnand %p209, %p210
    %p212 = pneg %p211
    // Predicated region
    $region9: #{message_passing.3} parent=5 // pred_check
      _
    $region10: #{message_passing.3} parent=5 // pred_check_branch
      %214 = sbr.rel (%p211) target = $region12
    $region11: #{message_passing.3} parent=5 // pred_region
      %s215 = ssub.s32 %s13, 1
      // Predicated region
      $region13: #{message_passing.3} parent=11 // pred_check
        %p216 = pneg %p138
      $region14: #{message_passing.3} parent=11 // pred_check_branch
        %218 = sbr.rel (%p216) target = $region16
      $region15: #{message_passing.3} parent=11 // pred_region
        _
      $region16: #{message_passing.3} parent=11 // pred_fallthru
        _
      // Predicated region
      $region17: #{message_passing.3} parent=11 // pred_check
        %p219 = pneg %p159
      $region18: #{message_passing.3} parent=11 // pred_check_branch
        %221 = sbr.rel (%p219) target = $region20
      $region19: #{message_passing.3} parent=11 // pred_region
        _
      $region20: #{message_passing.3} parent=11 // pred_fallthru
        _
      // Predicated region
      $region21: #{message_passing.3} parent=11 // pred_check
        %p222 = pneg %p180
      $region22: #{message_passing.3} parent=11 // pred_check_branch
        %224 = sbr.rel (%p222) target = $region24
      $region23: #{message_passing.3} parent=11 // pred_region
        _
      $region24: #{message_passing.3} parent=11 // pred_fallthru
        _
    $region12: #{message_passing.3} parent=5 // pred_fallthru
      _
    %p225 = scmp.lt.s32.totalorder %s13, 3
    // Predicated region
    $region25: #{message_passing.3} parent=5 // pred_check
      %p226 = pneg %p225
    $region26: #{message_passing.3} parent=5 // pred_check_branch
      %228 = sbr.rel (%p226) target = $region28
    $region27: #{message_passing.3} parent=5 // pred_region
      // Predicated region
      $region29: #{message_passing.3} parent=27 // pred_check
        %p229 = pneg %p33
      $region30: #{message_passing.3} parent=27 // pred_check_branch
        %231 = sbr.rel (%p229) target = $region32
      $region31: #{message_passing.3} parent=27 // pred_region
        %p232 = scmp.lt.s32.totalorder %s13, 2
        %s233 = scalar_select %p232, %s13, 2
        %s234 = smul.addr %s233, 8
        %s235 = scalar_lea.vmem %s0, %s234
      $region32: #{message_passing.3} parent=27 // pred_fallthru
        _
      // Predicated region
      $region33: #{message_passing.3} parent=27 // pred_check
        %p236 = pneg %p59
      $region34: #{message_passing.3} parent=27 // pred_check_branch
        %238 = sbr.rel (%p236) target = $region36
      $region35: #{message_passing.3} parent=27 // pred_region
        %p239 = scmp.lt.s32.totalorder %s13, 2
        %s240 = scalar_select %p239, %s13, 2
        %s241 = scalar_lea.vmem %s1, %s240
      $region36: #{message_passing.3} parent=27 // pred_fallthru
        _
      // Predicated region
      $region37: #{message_passing.3} parent=27 // pred_check
        %p242 = pneg %p85
      $region38: #{message_passing.3} parent=27 // pred_check_branch
        %244 = sbr.rel (%p242) target = $region40
      $region39: #{message_passing.3} parent=27 // pred_region
        %p245 = scmp.lt.s32.totalorder %s13, 2
        %s246 = scalar_select %p245, %s13, 2
        %s247 = smul.addr %s246, 8
        %s248 = scalar_lea.vmem %s2, %s247
      $region40: #{message_passing.3} parent=27 // pred_fallthru
        _
      // Predicated region
      $region41: #{message_passing.3} parent=27 // pred_check
        %p249 = pneg %p111
      $region42: #{message_passing.3} parent=27 // pred_check_branch
        %251 = sbr.rel (%p249) target = $region44
      $region43: #{message_passing.3} parent=27 // pred_region
        %p252 = scmp.lt.s32.totalorder %s13, 2
        %s253 = scalar_select %p252, %s13, 2
        %s254 = smul.addr %s253, 8
        %s255 = scalar_lea.vmem %s3, %s254
      $region44: #{message_passing.3} parent=27 // pred_fallthru
        _
    $region28: #{message_passing.3} parent=5 // pred_fallthru
      _
    %p256 = scmp.le.s32.totalorder 1, %s13
    %p257 = scmp.lt.s32.totalorder %s13, 4
    %p258 = pnand %p256, %p257
    %p259 = pneg %p258
    // Predicated region
    $region45: #{message_passing.3} parent=5 // pred_check
      _
    $region46: #{message_passing.3} parent=5 // pred_check_branch
      %261 = sbr.rel (%p258) target = $region48
    $region47: #{message_passing.3} parent=5 // pred_region
      %s262 = ssub.s32 %s13, 1
      %p263 = scmp.lt.s32.totalorder %s18, 2
      %s264 = scalar_select %p263, %s18, 2
      %s265 = smul.addr %s264, 8
      %s266 = scalar_lea.vmem %s0, %s265
      %p267 = pneg %p39
      %p268 = pneg %p36
      %p269 = scmp.lt.s32.totalorder %s18, 2
      %s270 = scalar_select %p269, %s18, 2
      %s271 = scalar_lea.vmem %s1, %s270
      %p272 = pneg %p65
      %p273 = pneg %p62
      %p274 = scmp.lt.s32.totalorder %s18, 2
      %s275 = scalar_select %p274, %s18, 2
      %s276 = smul.addr %s275, 8
      %s277 = scalar_lea.vmem %s2, %s276
      %p278 = pneg %p91
      %p279 = pneg %p88
      %p280 = scmp.lt.s32.totalorder %s18, 2
      %s281 = scalar_select %p280, %s18, 2
      %s282 = smul.addr %s281, 8
      %s283 = scalar_lea.vmem %s3, %s282
      %p284 = pneg %p117
      %p285 = pneg %p114
      %p286 = pneg %p138
      %p287 = pneg %p135
      %p288 = pneg %p159
      %p289 = pneg %p156
      %p290 = pneg %p180
      %p291 = pneg %p177
      %p292 = pneg %p201
      %p293 = pneg %p198
      %p294 = scmp.lt.s32.totalorder %s18, 2
      %s295 = scalar_select %p294, %s18, 2
      %s296 = smul.addr %s295, 8
      %s297 = scalar_lea.vmem %s0, %s296
      %p298 = scmp.lt.s32.totalorder %s18, 2
      %s299 = scalar_select %p298, %s18, 2
      %s300 = scalar_lea.vmem %s1, %s299
      %p301 = scmp.lt.s32.totalorder %s18, 2
      %s302 = scalar_select %p301, %s18, 2
      %s303 = smul.addr %s302, 8
      %s304 = scalar_lea.vmem %s2, %s303
      %p305 = scmp.lt.s32.totalorder %s18, 2
      %s306 = scalar_select %p305, %s18, 2
      %s307 = smul.addr %s306, 8
      %s308 = scalar_lea.vmem %s3, %s307
      %p309 = scmp.eq.s32.totalorder %s18, 0
      // Predicated region
      $region49: #{message_passing.3} parent=47 // pred_check
        %p310 = pneg %p309
      $region50: #{message_passing.3} parent=47 // pred_check_branch
        %312 = sbr.rel (%p310) target = $region52
      $region51: #{message_passing.3} parent=47 // pred_region
        %313 = vst [vmem:[%s7] sm:$0xff] 0.0
      $region52: #{message_passing.3} parent=47 // pred_fallthru
        _
      %v314 = vld [vmem:[%s297] sm:$0xff]
      %v315 = vld [vmem:[%s300] sm:$0x1]
      %v316 = vlaneseq
      %v317 = vand.u32 %v316, 127
      %318 = vset.pattern.permute.xlu0 0
      %319 = vperm.xlu0 %318, %v314
      %v320 = vpop.permute.xlu0 %319
      %vm321 = vcmp.eq.s32.totalorder %v317, %v320
      %v322 = vsel %vm321, 1, 0
      %v323 = vcvt.s32.f32 %v322
      %v324 = vlaneseq
      %v325 = vshrl.u32 %v324, 7
      %v326 = vlaneseq
      %v327 = vshrl.u32 %v326, 7
      %v328 = vsub.s32 0, %v327
      %v329 = vrot.slane %v315, %v328
      %vm330 = vcmp.eq.s32.totalorder %v325, %v329
      %v331 = vsel %vm330, 1, 0
      %v332 = vcvt.s32.f32 %v331
      %v333 = vld [vmem:[%s304] sm:$0xff]
      %v334 = vld [vmem:[%s5] sm:$0xff]
      %v335 = vld [vmem:[%s5 + $0x8] sm:$0xff]
      %v336 = vld [vmem:[%s6] sm:$0x1]
      %v338 = vlaneseq
      %v339 = vshrl.u32 %v338, 7
      %v340 = vsub.s32 0, %v339
      %v341 = vrot.slane %v336, %v340
      %vm343 = vcmask 130048
      %v345 = vsel %vm343, %v333, 0
      %347 = vmatprep.subr.mxu0 0.0
      %348 = vmatpush1.msra.mxu0 %v334
      %349 = vmatprep.subr.mxu0 0.0
      %350 = vmatpush1.msra.mxu0 %v335
      %351 = vmatprep.subr.mxu0 0.0
      %352 = vmatpush1.msra.mxu0 0.0
      %353 = vmatprep.subr.mxu0 0.0
      %354 = vmatpush1.msra.mxu0 0.0
      %355 = vmatprep.subr.mxu0 0.0
      %356 = vmatpush1.msra.mxu0 0.0
      %357 = vmatprep.subr.mxu0 0.0
      %358 = vmatpush1.msra.mxu0 0.0
      %359 = vmatprep.subr.mxu0 0.0
      %360 = vmatpush1.msra.mxu0 0.0
      %361 = vmatprep.subr.mxu0 0.0
      %362 = vmatpush1.msra.mxu0 0.0
      %363 = vmatprep.subr.mxu0 0.0
      %364 = vmatpush1.msra.mxu0 0.0
      %365 = vmatprep.subr.mxu0 0.0
      %366 = vmatpush1.msra.mxu0 0.0
      %367 = vmatprep.subr.mxu0 0.0
      %368 = vmatpush1.msra.mxu0 0.0
      %369 = vmatprep.subr.mxu0 0.0
      %370 = vmatpush1.msra.mxu0 0.0
      %371 = vmatprep.subr.mxu0 0.0
      %372 = vmatpush1.msra.mxu0 0.0
      %373 = vmatprep.subr.mxu0 0.0
      %374 = vmatpush1.msra.mxu0 0.0
      %375 = vmatprep.subr.mxu0 0.0
      %376 = vmatpush1.msra.mxu0 0.0
      %377 = vmatprep.subr.mxu0 0.0
      %378 = vmatpush1.msra.mxu0 0.0
      %379 = vmatprep.subr.mxu0 0.0
      %380 = vmatpush1.msra.mxu0 0.0
      %381 = vmatprep.subr.mxu0 0.0
      %382 = vmatpush1.msra.mxu0 0.0
      %383 = vmatprep.subr.mxu0 0.0
      %384 = vmatpush1.msra.mxu0 0.0
      %385 = vmatprep.subr.mxu0 0.0
      %386 = vmatpush1.msra.mxu0 0.0
      %387 = vmatprep.subr.mxu0 0.0
      %388 = vmatpush1.msra.mxu0 0.0
      %389 = vmatprep.subr.mxu0 0.0
      %390 = vmatpush1.msra.mxu0 0.0
      %391 = vmatprep.subr.mxu0 0.0
      %392 = vmatpush1.msra.mxu0 0.0
      %393 = vmatprep.subr.mxu0 0.0
      %394 = vmatpush1.msra.mxu0 0.0
      %395 = vmatprep.subr.mxu0 0.0
      %396 = vmatpush1.msra.mxu0 0.0
      %397 = vmatprep.subr.mxu0 0.0
      %398 = vmatpush1.msra.mxu0 0.0
      %399 = vmatprep.subr.mxu0 0.0
      %400 = vmatpush1.msra.mxu0 0.0
      %401 = vmatprep.subr.mxu0 0.0
      %402 = vmatpush1.msra.mxu0 0.0
      %403 = vmatprep.subr.mxu0 0.0
      %404 = vmatpush1.msra.mxu0 0.0
      %405 = vmatprep.subr.mxu0 0.0
      %406 = vmatpush1.msra.mxu0 0.0
      %407 = vmatprep.subr.mxu0 0.0
      %408 = vmatpush1.msra.mxu0 0.0
      %409 = vmatprep.subr.mxu0 0.0
      %410 = vmatpush1.msra.mxu0 0.0
      %411 = vmatprep.mubr.f32.mxu0 0.0
      %412 = vmatmul.mubr.f32.gmra.mrb[0].mxu0 %v345
      %v413 = vpop.f32.mrb[0].mxu0
      %v414 = vadd.f32 %v341, %v413
      %v415 = vpop.f32.mrb[0].mxu0
      %416 = vdwg.mxu0
      %v417 = vld [vmem:[%s4] sm:$0xff]
      %v418 = vld [vmem:[%s4 + $0x8] sm:$0xff]
      %vm419 = vcmask 64512
      %v421 = vsel %vm419, %v323, 0
      %423 = vmatprep.subr.mxu0 %v418
      %424 = vmatpush1.msra.mxu0 %v417
      %425 = vmatprep.subr.mxu0 0.0
      %426 = vmatpush1.msra.mxu0 0.0
      %427 = vmatprep.subr.mxu0 0.0
      %428 = vmatpush1.msra.mxu0 0.0
      %429 = vmatprep.subr.mxu0 0.0
      %430 = vmatpush1.msra.mxu0 0.0
      %431 = vmatprep.subr.mxu0 0.0
      %432 = vmatpush1.msra.mxu0 0.0
      %433 = vmatprep.subr.mxu0 0.0
      %434 = vmatpush1.msra.mxu0 0.0
      %435 = vmatprep.subr.mxu0 0.0
      %436 = vmatpush1.msra.mxu0 0.0
      %437 = vmatprep.subr.mxu0 0.0
      %438 = vmatpush1.msra.mxu0 0.0
      %439 = vmatprep.subr.mxu0 0.0
      %440 = vmatpush1.msra.mxu0 0.0
      %441 = vmatprep.subr.mxu0 0.0
      %442 = vmatpush1.msra.mxu0 0.0
      %443 = vmatprep.subr.mxu0 0.0
      %444 = vmatpush1.msra.mxu0 0.0
      %445 = vmatprep.subr.mxu0 0.0
      %446 = vmatpush1.msra.mxu0 0.0
      %447 = vmatprep.subr.mxu0 0.0
      %448 = vmatpush1.msra.mxu0 0.0
      %449 = vmatprep.subr.mxu0 0.0
      %450 = vmatpush1.msra.mxu0 0.0
      %451 = vmatprep.subr.mxu0 0.0
      %452 = vmatpush1.msra.mxu0 0.0
      %453 = vmatprep.subr.mxu0 0.0
      %454 = vmatpush1.msra.mxu0 0.0
      %455 = vmatprep.subr.mxu0 0.0
      %456 = vmatpush1.msra.mxu0 0.0
      %457 = vmatprep.subr.mxu0 0.0
      %458 = vmatpush1.msra.mxu0 0.0
      %459 = vmatprep.subr.mxu0 0.0
      %460 = vmatpush1.msra.mxu0 0.0
      %461 = vmatprep.subr.mxu0 0.0
      %462 = vmatpush1.msra.mxu0 0.0
      %463 = vmatprep.subr.mxu0 0.0
      %464 = vmatpush1.msra.mxu0 0.0
      %465 = vmatprep.subr.mxu0 0.0
      %466 = vmatpush1.msra.mxu0 0.0
      %467 = vmatprep.subr.mxu0 0.0
      %468 = vmatpush1.msra.mxu0 0.0
      %469 = vmatprep.subr.mxu0 0.0
      %470 = vmatpush1.msra.mxu0 0.0
      %471 = vmatprep.subr.mxu0 0.0
      %472 = vmatpush1.msra.mxu0 0.0
      %473 = vmatprep.subr.mxu0 0.0
      %474 = vmatpush1.msra.mxu0 0.0
      %475 = vmatprep.subr.mxu0 0.0
      %476 = vmatpush1.msra.mxu0 0.0
      %477 = vmatprep.subr.mxu0 0.0
      %478 = vmatpush1.msra.mxu0 0.0
      %479 = vmatprep.subr.mxu0 0.0
      %480 = vmatpush1.msra.mxu0 0.0
      %481 = vmatprep.subr.mxu0 0.0
      %482 = vmatpush1.msra.mxu0 0.0
      %483 = vmatprep.subr.mxu0 0.0
      %484 = vmatpush1.msra.mxu0 0.0
      %485 = vmatprep.subr.mxu0 0.0
      %486 = vmatpush1.msra.mxu0 0.0
      %487 = vmatprep.mubr.f32.mxu0 0.0
      %488 = vmatmul.mubr.f32.gmra.mrb[0].mxu0 %v421
      %v489 = vpop.f32.mrb[0].mxu0
      %v490 = vadd.f32 0.0, %v489
      %v491 = vpop.f32.mrb[0].mxu0
      %v492 = vadd.f32 0.0, %v491
      %493 = vdwg.mxu0
      %v494 = vmul.f32 %v490, %v414
      %v495 = vmul.f32 %v494, 0.57735026
      %v496 = vld [vmem:[%s308] sm:$0xff]
      %498 = vrot.lane.b32.xlu0 %v490, 32
      %v499 = vpop.permute.xlu0 %498
      %v501 = vmul.f32 %v495, %v499
      %503 = vset.pattern.permute.xlu0 0
      %504 = vperm.xlu0 %503, %v496
      %v505 = vpop.permute.xlu0 %504
      %v507 = vmul.f32 %v495, %v505
      %509 = vrot.lane.b32.xlu0 %v507, 96
      %v510 = vpop.permute.xlu0 %509
      %v512 = vadd.f32 %v501, %v510
      %v513 = vmul.f32 %v512, 0.17677669
      %v514 = vmul.f32 %v495, %v492
      %515 = vset.pattern.permute.xlu0 1
      %516 = vperm.xlu0 %515, %v496
      %v517 = vpop.permute.xlu0 %516
      %v519 = vmul.f32 %v495, %v517
      %521 = vrot.lane.b32.xlu0 %v519, 96
      %v522 = vpop.permute.xlu0 %521
      %v524 = vadd.f32 %v514, %v522
      %v525 = vmul.f32 %v524, 0.17677669
      %527 = vrot.lane.b32.xlu0 %v492, 96
      %v528 = vpop.permute.xlu0 %527
      %v530 = vmul.f32 %v495, %v528
      %531 = vset.pattern.permute.xlu0 2
      %532 = vperm.xlu0 %531, %v496
      %v533 = vpop.permute.xlu0 %532
      %v535 = vmul.f32 %v495, %v533
      %537 = vrot.lane.b32.xlu0 %v535, 96
      %v538 = vpop.permute.xlu0 %537
      %v540 = vadd.f32 %v530, %v538
      %v541 = vmul.f32 %v540, 0.17677669
      %543 = vrot.lane.b32.xlu0 %v495, 64
      %v544 = vpop.permute.xlu0 %543
      %547 = vrot.lane.b32.xlu0 %v513, 32
      %v548 = vpop.permute.xlu0 %547
      %551 = vrot.lane.b32.xlu0 %v525, 64
      %v552 = vpop.permute.xlu0 %551
      %555 = vrot.lane.b32.xlu0 %v541, 96
      %v556 = vpop.permute.xlu0 %555
      %vm558 = vcmask 261120
      %v559 = vsel %vm558, %v544, %v548
      %vm560 = vcmask 523264
      %v561 = vsel %vm560, %v559, %v552
      %vm562 = vcmask 785408
      %v563 = vsel %vm562, %v561, %v556
      %v564 = vld [vmem:[%s7] sm:$0xff]
      %v566 = vsel %vm419, %v332, 0
      %568 = vmatprep.subr.mxu0 0.0
      %569 = vmatpush1.msra.mxu0 %v563
      %570 = vmatprep.subr.mxu0 0.0
      %571 = vmatpush1.msra.mxu0 0.0
      %572 = vmatprep.subr.mxu0 0.0
      %573 = vmatpush1.msra.mxu0 0.0
      %574 = vmatprep.subr.mxu0 0.0
      %575 = vmatpush1.msra.mxu0 0.0
      %576 = vmatprep.subr.mxu0 0.0
      %577 = vmatpush1.msra.mxu0 0.0
      %578 = vmatprep.subr.mxu0 0.0
      %579 = vmatpush1.msra.mxu0 0.0
      %580 = vmatprep.subr.mxu0 0.0
      %581 = vmatpush1.msra.mxu0 0.0
      %582 = vmatprep.subr.mxu0 0.0
      %583 = vmatpush1.msra.mxu0 0.0
      %584 = vmatprep.subr.mxu0 0.0
      %585 = vmatpush1.msra.mxu0 0.0
      %586 = vmatprep.subr.mxu0 0.0
      %587 = vmatpush1.msra.mxu0 0.0
      %588 = vmatprep.subr.mxu0 0.0
      %589 = vmatpush1.msra.mxu0 0.0
      %590 = vmatprep.subr.mxu0 0.0
      %591 = vmatpush1.msra.mxu0 0.0
      %592 = vmatprep.subr.mxu0 0.0
      %593 = vmatpush1.msra.mxu0 0.0
      %594 = vmatprep.subr.mxu0 0.0
      %595 = vmatpush1.msra.mxu0 0.0
      %596 = vmatprep.subr.mxu0 0.0
      %597 = vmatpush1.msra.mxu0 0.0
      %598 = vmatprep.subr.mxu0 0.0
      %599 = vmatpush1.msra.mxu0 0.0
      %600 = vmatprep.subr.mxu0 0.0
      %601 = vmatpush1.msra.mxu0 0.0
      %602 = vmatprep.subr.mxu0 0.0
      %603 = vmatpush1.msra.mxu0 0.0
      %604 = vmatprep.subr.mxu0 0.0
      %605 = vmatpush1.msra.mxu0 0.0
      %606 = vmatprep.subr.mxu0 0.0
      %607 = vmatpush1.msra.mxu0 0.0
      %608 = vmatprep.subr.mxu0 0.0
      %609 = vmatpush1.msra.mxu0 0.0
      %610 = vmatprep.subr.mxu0 0.0
      %611 = vmatpush1.msra.mxu0 0.0
      %612 = vmatprep.subr.mxu0 0.0
      %613 = vmatpush1.msra.mxu0 0.0
      %614 = vmatprep.subr.mxu0 0.0
      %615 = vmatpush1.msra.mxu0 0.0
      %616 = vmatprep.subr.mxu0 0.0
      %617 = vmatpush1.msra.mxu0 0.0
      %618 = vmatprep.subr.mxu0 0.0
      %619 = vmatpush1.msra.mxu0 0.0
      %620 = vmatprep.subr.mxu0 0.0
      %621 = vmatpush1.msra.mxu0 0.0
      %622 = vmatprep.subr.mxu0 0.0
      %623 = vmatpush1.msra.mxu0 0.0
      %624 = vmatprep.subr.mxu0 0.0
      %625 = vmatpush1.msra.mxu0 0.0
      %626 = vmatprep.subr.mxu0 0.0
      %627 = vmatpush1.msra.mxu0 0.0
      %628 = vmatprep.subr.mxu0 0.0
      %629 = vmatpush1.msra.mxu0 0.0
      %630 = vmatprep.subr.mxu0 0.0
      %631 = vmatpush1.msra.mxu0 0.0
      %632 = vmatprep.mubr.f32.mxu0 0.0
      %633 = vmatmul.mubr.f32.gmra.mrb[0].mxu0 %v566
      %v634 = vpop.f32.mrb[0].mxu0
      %v635 = vadd.f32 0.0, %v634
      %v636 = vpop.f32.mrb[0].mxu0
      %637 = vdwg.mxu0
      %v638 = vadd.f32 %v564, %v635
      %639 = vst [vmem:[%s7] sm:$0xff] %v638
      // Predicated region
      $region53: #{message_passing.3} parent=47 // pred_check
        %p640 = pneg %p198
      $region54: #{message_passing.3} parent=47 // pred_check_branch
        %642 = sbr.rel (%p640) target = $region56
      $region55: #{message_passing.3} parent=47 // pred_region
        _
      $region56: #{message_passing.3} parent=47 // pred_fallthru
        _
      // Predicated region
      $region57: #{message_passing.3} parent=47 // pred_check
        %p643 = pneg %p198
      $region58: #{message_passing.3} parent=47 // pred_check_branch
        %645 = sbr.rel (%p643) target = $region60
      $region59: #{message_passing.3} parent=47 // pred_region
        _
      $region60: #{message_passing.3} parent=47 // pred_fallthru
        _
    $region48: #{message_passing.3} parent=5 // pred_fallthru
      _
    %p646 = scmp.le.s32.totalorder 2, %s13
    // Predicated region
    $region61: #{message_passing.3} parent=5 // pred_check
      %p647 = pneg %p646
    $region62: #{message_passing.3} parent=5 // pred_check_branch
      %649 = sbr.rel (%p647) target = $region64
    $region63: #{message_passing.3} parent=5 // pred_region
      %s650 = ssub.s32 %s13, 2
    $region64: #{message_passing.3} parent=5 // pred_fallthru
      _
  $region6: #{message_passing.3} parent=0 // loop_footer
    %s17 = sadd.s32 1, %s13
  $region7: #{message_passing.3} parent=0 // loop_footer_branch
    %12 = sbr.rel target = $region3
  $region8: #{message_passing.3} parent=0 // loop_exit
    _

</llo_original>
